<compile_context>
chip_gen: v7x
topology: tpu7x:2x2x1
jax: 0.10.0
libtpu: 0.0.40
codegen_flags: <defaults>
</compile_context>

<pallas_src>
import functools

import jax
import jax.numpy as jnp
from jax.experimental import pallas as pl
from jax.experimental.pallas import tpu as pltpu

PART = 6          # PCB uses 6 horizontal body parts
BN_EPS = 1e-5


def _pool_kernel(x_ref, pm_ref, o_ref, *, inv_s):
    """Per-part spatial average pooling.

    x_ref:  (tr, HW)   rows of the (N*C, H*W) feature map (native NCHW order)
    pm_ref: (HW, PART) 0/1 part-membership indicator
    o_ref:  (tr, PART) per-part spatial means (f32)
    """
    x = x_ref[...]
    # Sum over each part's spatial window via one MXU matmul (f32 accumulate),
    # then scale by 1/S.  Output has only 6 lanes, but it is ~HW/PART smaller
    # than the input, so the masked stores are negligible.
    sums = jnp.dot(x, pm_ref[...], preferred_element_type=jnp.float32)
    o_ref[...] = sums * inv_s


def _part_head_kernel(p_ref, w_ref, b_ref, o_ref):
    """ClassBlock.add_block for one part: 1x1 conv (BN scale folded) + shift + ReLU.

    p_ref: (tn, C)  pooled features of this part
    w_ref: (C, B)   scale-folded 1x1-conv weight of this part
    b_ref: (1, B)   folded BN shift
    o_ref: (tn, B)  output tile, written straight into the (N, PART*B) concat
    """
    y = jnp.dot(p_ref[...], w_ref[...], preferred_element_type=jnp.float32)
    y = y + b_ref[...]
    o_ref[...] = jnp.maximum(y, 0.0).astype(o_ref.dtype)


def pcb_forward(feat, conv_w, bn_gamma, bn_beta, bn_mean, bn_var, eps=BN_EPS):
    """feat: (N, C, H, W) backbone output (NCHW).  Returns (N, PART * B)."""
    N, C, H, W = feat.shape
    assert H % PART == 0, "adaptive pool implemented for H % 6 == 0 (PCB uses H=24)"
    hs = H // PART
    S = hs * W
    HW = H * W
    Bd = conv_w.shape[1]
    itemsize = feat.dtype.itemsize

    # ---------------- Stage 1: pooling, NCHW consumed natively ----------------
    # (N, C, H, W) -> (N*C, H*W) is a free row-major view; part p occupies the
    # contiguous column range [p*S, (p+1)*S).
    rows = N * C
    x2d = feat.reshape(rows, HW)
    part_of_col = jnp.arange(HW, dtype=jnp.int32) // S                  # (HW,)
    pool_mat = (part_of_col[:, None]
                == jnp.arange(PART, dtype=jnp.int32)[None, :]).astype(feat.dtype)

    # Row tile: full dim if small, else 4096 rows (multiple of 8). Keeps each
    # double-buffered block a few MiB -> fits v7x's smaller VMEM and pipelines.
    tr = rows if rows <= 4096 else 4096
    n_row_tiles = pl.cdiv(rows, tr)

    pooled2d = pl.pallas_call(
        functools.partial(_pool_kernel, inv_s=1.0 / float(S)),
        out_shape=jax.ShapeDtypeStruct((rows, PART), jnp.float32),
        grid=(n_row_tiles,),
        in_specs=[
            pl.BlockSpec((tr, HW), lambda r: (r, 0)),
            pl.BlockSpec((HW, PART), lambda r: (0, 0)),   # resident across steps
        ],
        out_specs=pl.BlockSpec((tr, PART), lambda r: (r, 0)),
        compiler_params=pltpu.CompilerParams(
            dimension_semantics=("parallel",)),
        cost_estimate=pl.CostEstimate(
            flops=2 * rows * HW * PART,
            transcendentals=0,
            bytes_accessed=rows * HW * itemsize + HW * PART * itemsize
                           + rows * PART * 4),
    )(x2d, pool_mat)

    # ------- glue: only the small pooled tensor is rearranged / folded -------
    pooled = pooled2d.reshape(N, C, PART).transpose(2, 0, 1)            # (PART, N, C)

    scale = (bn_gamma / jnp.sqrt(bn_var + eps)).astype(jnp.float32)     # (PART, Bd)
    shift = (bn_beta.astype(jnp.float32) - bn_mean.astype(jnp.float32) * scale)
    w = jnp.transpose(conv_w[..., 0, 0], (0, 2, 1)).astype(jnp.float32)  # (PART, C, Bd)
    w = w * scale[:, None, :]                 # fold BN scale into the conv weight
    shift = shift[:, None, :]                                           # (PART, 1, Bd)

    # ---------------- Stage 2: per-part 1x1 conv + BN shift + ReLU ----------------
    tn = N if N <= 256 else 256
    n_tiles = pl.cdiv(N, tn)

    in_specs = [
        pl.BlockSpec((None, tn, C), lambda i, n: (i, n, 0)),    # pooled part slice
        pl.BlockSpec((None, C, Bd), lambda i, n: (i, 0, 0)),    # folded conv weight
        pl.BlockSpec((None, 1, Bd), lambda i, n: (i, 0, 0)),    # BN shift
    ]
    ce2 = pl.CostEstimate(
        flops=2 * PART * N * C * Bd,
        transcendentals=0,
        bytes_accessed=PART * N * C * 4 + PART * C * Bd * 4
                       + PART * Bd * 4 + N * PART * Bd * 4)
    cp2 = pltpu.CompilerParams(dimension_semantics=("parallel", "parallel"))

    if Bd % 128 == 0:
        # Lane-dense direct write into torch.cat(scores, 1) layout: no post-transpose.
        return pl.pallas_call(
            _part_head_kernel,
            out_shape=jax.ShapeDtypeStruct((N, PART * Bd), jnp.float32),
            grid=(PART, n_tiles),            # PART outer -> weight not re-DMA'd
            in_specs=in_specs,
            out_specs=pl.BlockSpec((tn, Bd), lambda i, n: (n, i)),
            compiler_params=cp2,
            cost_estimate=ce2,
        )(pooled, w, shift)

    # Fallback for Bd not a multiple of 128: part-major output + tiny transpose.
    out = pl.pallas_call(
        _part_head_kernel,
        out_shape=jax.ShapeDtypeStruct((PART, N, Bd), jnp.float32),
        grid=(PART, n_tiles),
        in_specs=in_specs,
        out_specs=pl.BlockSpec((None, tn, Bd), lambda i, n: (i, n, 0)),
        compiler_params=cp2,
        cost_estimate=ce2,
    )(pooled, w, shift)
    return jnp.transpose(out, (1, 0, 2)).reshape(N, PART * Bd)


def _reference(feat, conv_w, bn_gamma, bn_beta, bn_mean, bn_var, eps=BN_EPS):
    """Plain-JAX reference mirroring the PyTorch forward (eval mode)."""
    N, C, H, W = feat.shape
    hs = H // PART
    pooled = jnp.mean(feat.reshape(N, C, PART, hs * W), axis=-1)        # (N, C, PART)
    outs = []
    for i in range(PART):
        z = pooled[:, :, i] @ conv_w[i, :, :, 0, 0].T
        s = bn_gamma[i] / jnp.sqrt(bn_var[i] + eps)
        z = z * s + (bn_beta[i] - bn_mean[i] * s)
        outs.append(jnp.maximum(z, 0.0))
    return jnp.concatenate(outs, axis=1)


if __name__ == "__main__":
    key = jax.random.PRNGKey(0)
    # Small stand-ins for (N, 2048, 24, 8) feature maps and num_bottleneck=256.
    N, C, H, W = 4, 64, 12, 4
    Bd = 128

    ks = jax.random.split(key, 6)
    feat = jax.random.normal(ks[0], (N, C, H, W), dtype=jnp.float32)

    # Conv2d kaiming_normal_(mode='fan_out', relu): std = sqrt(2 / (B*1*1)).
    conv_w = (jax.random.normal(ks[1], (PART, Bd, C, 1, 1), dtype=jnp.float32)
              * jnp.sqrt(2.0 / Bd))
    # BatchNorm2d eval-mode params / running stats (randomized to exercise folding).
    bn_gamma = 1.0 + 0.1 * jax.random.normal(ks[2], (PART, Bd), dtype=jnp.float32)
    bn_beta = 0.1 * jax.random.normal(ks[3], (PART, Bd), dtype=jnp.float32)
    bn_mean = 0.1 * jax.random.normal(ks[4], (PART, Bd), dtype=jnp.float32)
    bn_var = jax.random.uniform(ks[5], (PART, Bd), dtype=jnp.float32,
                                minval=0.5, maxval=1.5)

    out = pcb_forward(feat, conv_w, bn_gamma, bn_beta, bn_mean, bn_var)
    out = jax.block_until_ready(out)
    assert out.shape == (N, PART * Bd), out.shape

    ref = _reference(feat, conv_w, bn_gamma, bn_beta, bn_mean, bn_var)
    max_err = float(jnp.max(jnp.abs(out - ref)))
    assert jnp.allclose(out, ref, atol=1e-3, rtol=1e-3), f"mismatch vs reference: {max_err}"

    print("KERNEL_OK")
</pallas_src>

<mosaic_0001>
module attributes {stable_mosaic.version = 11 : i64} {
  func.func @_pool_kernel(%arg0: i32, %arg1: memref<256x48xf32, #tpu.memory_space<vmem>>, %arg2: memref<48x6xf32, #tpu.memory_space<vmem>>, %arg3: memref<256x6xf32, #tpu.memory_space<vmem>>) attributes {dimension_semantics = [#tpu.dimension_semantics<parallel>], iteration_bounds = array<i64: 1>, scalar_prefetch = 0 : i64, scratch_operands = 0 : i64, tpu.core_type = #tpu.core_type<tc>, window_params = [{transform_indices = @transform_0, window_bounds = array<i64: 256, 48>}, {pipeline_mode = #tpu.pipeline_mode<synchronous>, transform_indices = @transform_1, window_bounds = array<i64: 48, 6>}, {transform_indices = @transform_2, window_bounds = array<i64: 256, 6>}]} {
    %c0 = arith.constant 0 : index
    %c0_0 = arith.constant 0 : index
    %0 = vector.load %arg1[%c0, %c0_0] : memref<256x48xf32, #tpu.memory_space<vmem>>, vector<256x48xf32>
    %c0_1 = arith.constant 0 : index
    %c0_2 = arith.constant 0 : index
    %1 = vector.load %arg2[%c0_1, %c0_2] : memref<48x6xf32, #tpu.memory_space<vmem>>, vector<48x6xf32>
    %cst = arith.constant dense<0.000000e+00> : vector<256x6xf32>
    %2 = tpu.matmul %0, %1, %cst {dimension_numbers = #tpu.dot_dimension_numbers<[1], [0], [0], [1], [0, 0, 1, 1], [], []>} : vector<256x48xf32>, vector<48x6xf32>, vector<256x6xf32> -> vector<256x6xf32>
    %cst_3 = arith.constant 1.250000e-01 : f32
    %3 = vector.broadcast %cst_3 : f32 to vector<256x6xf32>
    %4 = arith.mulf %2, %3 : vector<256x6xf32>
    %c0_4 = arith.constant 0 : index
    %c0_5 = arith.constant 0 : index
    %5 = vector.load %arg3[%c0_4, %c0_5] : memref<256x6xf32, #tpu.memory_space<vmem>>, vector<256x6xf32>
    tpu.vector_store %arg3[%c0_4, %c0_5], %4 {strides = array<i32>} : memref<256x6xf32, #tpu.memory_space<vmem>>, vector<256x6xf32>,
    return
  }
  func.func @transform_0(%arg0: i32) -> (i32, i32) {
    %c0_i32 = arith.constant 0 : i32
    %c0_i32_0 = arith.constant 0 : i32
    return %arg0, %c0_i32 : i32, i32
  }
  func.func @transform_1(%arg0: i32) -> (i32, i32) {
    %c0_i32 = arith.constant 0 : i32
    %c0_i32_0 = arith.constant 0 : i32
    %c0_i32_1 = arith.constant 0 : i32
    return %c0_i32, %c0_i32_0 : i32, i32
  }
  func.func @transform_2(%arg0: i32) -> (i32, i32) {
    %c0_i32 = arith.constant 0 : i32
    %c0_i32_0 = arith.constant 0 : i32
    return %arg0, %c0_i32 : i32, i32
  }
}

</mosaic_0001>

<llo_original>
// kernel: tpu_custom_call.1
$region0: #{tpu_custom_call.1}
  #allocation0 [shape = 'u32[]', space=smem, size = 0x4, offset = 0x4, fixed_abs, tag = 'smem constant byte address 0x4 - core index']
  #allocation1 [shape = 'u32[144,128]{1,0:T(1,128)}', space=vmem, size = 0x12000, scoped, tag = 'internal scratch']
  %s0 = inlined_call_operand.vmem [shape: f32[256,48], index: 0, kind: input, shape index: {}]
  %s1 = inlined_call_operand.vmem [shape: f32[48,6], index: 1, kind: input, shape index: {}]
  %s2 = inlined_call_operand.vmem [shape: f32[256,6], index: 2, kind: output, shape index: {}]
  %s3 = sld [smem:[#allocation0]]
  $region18: #{tpu_custom_call.1} parent=0
    _
  %s5 = ssub.s32 1, %s3
  %s6 = scalar_select 0, %s5, %s3
  // Predicated region
  $region2: #{tpu_custom_call.1} parent=0 // pred_check
    _
  $region3: #{tpu_custom_call.1} parent=0 // pred_check_branch
    %8 = sbr.rel (0) target = $region5
  $region4: #{tpu_custom_call.1} parent=0 // pred_region
    _
  $region5: #{tpu_custom_call.1} parent=0 // pred_fallthru
    _
  // Predicated region
  $region6: #{tpu_custom_call.1} parent=0 // pred_check
    _
  $region7: #{tpu_custom_call.1} parent=0 // pred_check_branch
    %10 = sbr.rel (0) target = $region9
  $region8: #{tpu_custom_call.1} parent=0 // pred_region
    _
  $region9: #{tpu_custom_call.1} parent=0 // pred_fallthru
    _
  %v11 = vld [vmem:[%s0] sm:$0xff]
  %v12 = vld [vmem:[%s0 + $0x8] sm:$0xff]
  %v13 = vld [vmem:[%s0 + $0x10] sm:$0xff]
  %v14 = vld [vmem:[%s0 + $0x18] sm:$0xff]
  %v15 = vld [vmem:[%s0 + $0x20] sm:$0xff]
  %v16 = vld [vmem:[%s0 + $0x28] sm:$0xff]
  %v17 = vld [vmem:[%s0 + $0x30] sm:$0xff]
  %v18 = vld [vmem:[%s0 + $0x38] sm:$0xff]
  %v19 = vld [vmem:[%s0 + $0x40] sm:$0xff]
  %v20 = vld [vmem:[%s0 + $0x48] sm:$0xff]
  %v21 = vld [vmem:[%s0 + $0x50] sm:$0xff]
  %v22 = vld [vmem:[%s0 + $0x58] sm:$0xff]
  %v23 = vld [vmem:[%s0 + $0x60] sm:$0xff]
  %v24 = vld [vmem:[%s0 + $0x68] sm:$0xff]
  %v25 = vld [vmem:[%s0 + $0x70] sm:$0xff]
  %v26 = vld [vmem:[%s0 + $0x78] sm:$0xff]
  %v27 = vld [vmem:[%s0 + $0x80] sm:$0xff]
  %v28 = vld [vmem:[%s0 + $0x88] sm:$0xff]
  %v29 = vld [vmem:[%s0 + $0x90] sm:$0xff]
  %v30 = vld [vmem:[%s0 + $0x98] sm:$0xff]
  %v31 = vld [vmem:[%s0 + $0xa0] sm:$0xff]
  %v32 = vld [vmem:[%s0 + $0xa8] sm:$0xff]
  %v33 = vld [vmem:[%s0 + $0xb0] sm:$0xff]
  %v34 = vld [vmem:[%s0 + $0xb8] sm:$0xff]
  %v35 = vld [vmem:[%s0 + $0xc0] sm:$0xff]
  %v36 = vld [vmem:[%s0 + $0xc8] sm:$0xff]
  %v37 = vld [vmem:[%s0 + $0xd0] sm:$0xff]
  %v38 = vld [vmem:[%s0 + $0xd8] sm:$0xff]
  %v39 = vld [vmem:[%s0 + $0xe0] sm:$0xff]
  %v40 = vld [vmem:[%s0 + $0xe8] sm:$0xff]
  %v41 = vld [vmem:[%s0 + $0xf0] sm:$0xff]
  %v42 = vld [vmem:[%s0 + $0xf8] sm:$0xff]
  %v43 = vld [vmem:[%s1] sm:$0xff]
  %v44 = vld [vmem:[%s1 + $0x8] sm:$0xff]
  %v45 = vld [vmem:[%s1 + $0x10] sm:$0xff]
  %v46 = vld [vmem:[%s1 + $0x18] sm:$0xff]
  %v47 = vld [vmem:[%s1 + $0x20] sm:$0xff]
  %v48 = vld [vmem:[%s1 + $0x28] sm:$0xff]
  %vm49 = vcmask 392192
  %v51 = vsel %vm49, %v11, 0
  %v54 = vsel %vm49, %v12, 0
  %v57 = vsel %vm49, %v13, 0
  %v60 = vsel %vm49, %v14, 0
  %v63 = vsel %vm49, %v15, 0
  %v66 = vsel %vm49, %v16, 0
  %v69 = vsel %vm49, %v17, 0
  %v72 = vsel %vm49, %v18, 0
  %v75 = vsel %vm49, %v19, 0
  %v78 = vsel %vm49, %v20, 0
  %v81 = vsel %vm49, %v21, 0
  %v84 = vsel %vm49, %v22, 0
  %v87 = vsel %vm49, %v23, 0
  %v90 = vsel %vm49, %v24, 0
  %v93 = vsel %vm49, %v25, 0
  %v96 = vsel %vm49, %v26, 0
  %v99 = vsel %vm49, %v27, 0
  %v102 = vsel %vm49, %v28, 0
  %v105 = vsel %vm49, %v29, 0
  %v108 = vsel %vm49, %v30, 0
  %v111 = vsel %vm49, %v31, 0
  %v114 = vsel %vm49, %v32, 0
  %v117 = vsel %vm49, %v33, 0
  %v120 = vsel %vm49, %v34, 0
  %v123 = vsel %vm49, %v35, 0
  %v126 = vsel %vm49, %v36, 0
  %v129 = vsel %vm49, %v37, 0
  %v132 = vsel %vm49, %v38, 0
  %v135 = vsel %vm49, %v39, 0
  %v138 = vsel %vm49, %v40, 0
  %v141 = vsel %vm49, %v41, 0
  %v144 = vsel %vm49, %v42, 0
  %146 = vmatprep.subr.mxu0 0.0
  %147 = vmatpush1.msra.mxu0 %v43
  %148 = vmatprep.subr.mxu0 0.0
  %149 = vmatpush1.msra.mxu0 %v44
  %150 = vmatprep.subr.mxu0 0.0
  %151 = vmatpush1.msra.mxu0 %v45
  %152 = vmatprep.subr.mxu0 0.0
  %153 = vmatpush1.msra.mxu0 %v46
  %154 = vmatprep.subr.mxu0 0.0
  %155 = vmatpush1.msra.mxu0 %v47
  %156 = vmatprep.subr.mxu0 0.0
  %157 = vmatpush1.msra.mxu0 %v48
  %158 = vmatprep.subr.mxu0 0.0
  %159 = vmatpush1.msra.mxu0 0.0
  %160 = vmatprep.subr.mxu0 0.0
  %161 = vmatpush1.msra.mxu0 0.0
  %162 = vmatprep.subr.mxu0 0.0
  %163 = vmatpush1.msra.mxu0 0.0
  %164 = vmatprep.subr.mxu0 0.0
  %165 = vmatpush1.msra.mxu0 0.0
  %166 = vmatprep.subr.mxu0 0.0
  %167 = vmatpush1.msra.mxu0 0.0
  %168 = vmatprep.subr.mxu0 0.0
  %169 = vmatpush1.msra.mxu0 0.0
  %170 = vmatprep.subr.mxu0 0.0
  %171 = vmatpush1.msra.mxu0 0.0
  %172 = vmatprep.subr.mxu0 0.0
  %173 = vmatpush1.msra.mxu0 0.0
  %174 = vmatprep.subr.mxu0 0.0
  %175 = vmatpush1.msra.mxu0 0.0
  %176 = vmatprep.subr.mxu0 0.0
  %177 = vmatpush1.msra.mxu0 0.0
  %178 = vmatprep.subr.mxu0 0.0
  %179 = vmatpush1.msra.mxu0 0.0
  %180 = vmatprep.subr.mxu0 0.0
  %181 = vmatpush1.msra.mxu0 0.0
  %182 = vmatprep.subr.mxu0 0.0
  %183 = vmatpush1.msra.mxu0 0.0
  %184 = vmatprep.subr.mxu0 0.0
  %185 = vmatpush1.msra.mxu0 0.0
  %186 = vmatprep.subr.mxu0 0.0
  %187 = vmatpush1.msra.mxu0 0.0
  %188 = vmatprep.subr.mxu0 0.0
  %189 = vmatpush1.msra.mxu0 0.0
  %190 = vmatprep.subr.mxu0 0.0
  %191 = vmatpush1.msra.mxu0 0.0
  %192 = vmatprep.subr.mxu0 0.0
  %193 = vmatpush1.msra.mxu0 0.0
  %194 = vmatprep.subr.mxu0 0.0
  %195 = vmatpush1.msra.mxu0 0.0
  %196 = vmatprep.subr.mxu0 0.0
  %197 = vmatpush1.msra.mxu0 0.0
  %198 = vmatprep.subr.mxu0 0.0
  %199 = vmatpush1.msra.mxu0 0.0
  %200 = vmatprep.subr.mxu0 0.0
  %201 = vmatpush1.msra.mxu0 0.0
  %202 = vmatprep.subr.mxu0 0.0
  %203 = vmatpush1.msra.mxu0 0.0
  %204 = vmatprep.subr.mxu0 0.0
  %205 = vmatpush1.msra.mxu0 0.0
  %206 = vmatprep.subr.mxu0 0.0
  %207 = vmatpush1.msra.mxu0 0.0
  %208 = vmatprep.subr.mxu0 0.0
  %209 = vmatpush1.msra.mxu0 0.0
  %210 = vmatprep.mubr.f32.mxu0 0.0
  %211 = vmatmul.mubr.f32.gmra.mrb[0].mxu0 %v51
  %v212 = vpop.f32.mrb[0].mxu0
  %v213 = vadd.f32 0.0, %v212
  %v214 = vpop.f32.mrb[0].mxu0
  %215 = vmatprep.mubr.f32.mxu0 0.0
  %216 = vmatmul.mubr.f32.gmra.mrb[0].mxu0 %v54
  %v217 = vpop.f32.mrb[0].mxu0
  %v218 = vadd.f32 0.0, %v217
  %v219 = vpop.f32.mrb[0].mxu0
  %220 = vmatprep.mubr.f32.mxu0 0.0
  %221 = vmatmul.mubr.f32.gmra.mrb[0].mxu0 %v57
  %v222 = vpop.f32.mrb[0].mxu0
  %v223 = vadd.f32 0.0, %v222
  %v224 = vpop.f32.mrb[0].mxu0
  %225 = vmatprep.mubr.f32.mxu0 0.0
  %226 = vmatmul.mubr.f32.gmra.mrb[0].mxu0 %v60
  %v227 = vpop.f32.mrb[0].mxu0
  %v228 = vadd.f32 0.0, %v227
  %v229 = vpop.f32.mrb[0].mxu0
  %230 = vmatprep.mubr.f32.mxu0 0.0
  %231 = vmatmul.mubr.f32.gmra.mrb[0].mxu0 %v63
  %v232 = vpop.f32.mrb[0].mxu0
  %v233 = vadd.f32 0.0, %v232
  %v234 = vpop.f32.mrb[0].mxu0
  %235 = vmatprep.mubr.f32.mxu0 0.0
  %236 = vmatmul.mubr.f32.gmra.mrb[0].mxu0 %v66
  %v237 = vpop.f32.mrb[0].mxu0
  %v238 = vadd.f32 0.0, %v237
  %v239 = vpop.f32.mrb[0].mxu0
  %240 = vmatprep.mubr.f32.mxu0 0.0
  %241 = vmatmul.mubr.f32.gmra.mrb[0].mxu0 %v69
  %v242 = vpop.f32.mrb[0].mxu0
  %v243 = vadd.f32 0.0, %v242
  %v244 = vpop.f32.mrb[0].mxu0
  %245 = vmatprep.mubr.f32.mxu0 0.0
  %246 = vmatmul.mubr.f32.gmra.mrb[0].mxu0 %v72
  %v247 = vpop.f32.mrb[0].mxu0
  %v248 = vadd.f32 0.0, %v247
  %v249 = vpop.f32.mrb[0].mxu0
  %250 = vmatprep.mubr.f32.mxu0 0.0
  %251 = vmatmul.mubr.f32.gmra.mrb[0].mxu0 %v75
  %v252 = vpop.f32.mrb[0].mxu0
  %v253 = vadd.f32 0.0, %v252
  %v254 = vpop.f32.mrb[0].mxu0
  %255 = vmatprep.mubr.f32.mxu0 0.0
  %256 = vmatmul.mubr.f32.gmra.mrb[0].mxu0 %v78
  %v257 = vpop.f32.mrb[0].mxu0
  %v258 = vadd.f32 0.0, %v257
  %v259 = vpop.f32.mrb[0].mxu0
  %260 = vmatprep.mubr.f32.mxu0 0.0
  %261 = vmatmul.mubr.f32.gmra.mrb[0].mxu0 %v81
  %v262 = vpop.f32.mrb[0].mxu0
  %v263 = vadd.f32 0.0, %v262
  %v264 = vpop.f32.mrb[0].mxu0
  %265 = vmatprep.mubr.f32.mxu0 0.0
  %266 = vmatmul.mubr.f32.gmra.mrb[0].mxu0 %v84
  %v267 = vpop.f32.mrb[0].mxu0
  %v268 = vadd.f32 0.0, %v267
  %v269 = vpop.f32.mrb[0].mxu0
  %270 = vmatprep.mubr.f32.mxu0 0.0
  %271 = vmatmul.mubr.f32.gmra.mrb[0].mxu0 %v87
  %v272 = vpop.f32.mrb[0].mxu0
  %v273 = vadd.f32 0.0, %v272
  %v274 = vpop.f32.mrb[0].mxu0
  %275 = vmatprep.mubr.f32.mxu0 0.0
  %276 = vmatmul.mubr.f32.gmra.mrb[0].mxu0 %v90
  %v277 = vpop.f32.mrb[0].mxu0
  %v278 = vadd.f32 0.0, %v277
  %v279 = vpop.f32.mrb[0].mxu0
  %280 = vmatprep.mubr.f32.mxu0 0.0
  %281 = vmatmul.mubr.f32.gmra.mrb[0].mxu0 %v93
  %v282 = vpop.f32.mrb[0].mxu0
  %v283 = vadd.f32 0.0, %v282
  %v284 = vpop.f32.mrb[0].mxu0
  %285 = vmatprep.mubr.f32.mxu0 0.0
  %286 = vmatmul.mubr.f32.gmra.mrb[0].mxu0 %v96
  %v287 = vpop.f32.mrb[0].mxu0
  %v288 = vadd.f32 0.0, %v287
  %v289 = vpop.f32.mrb[0].mxu0
  %290 = vmatprep.mubr.f32.mxu0 0.0
  %291 = vmatmul.mubr.f32.gmra.mrb[0].mxu0 %v99
  %v292 = vpop.f32.mrb[0].mxu0
  %v293 = vadd.f32 0.0, %v292
  %v294 = vpop.f32.mrb[0].mxu0
  %295 = vmatprep.mubr.f32.mxu0 0.0
  %296 = vmatmul.mubr.f32.gmra.mrb[0].mxu0 %v102
  %v297 = vpop.f32.mrb[0].mxu0
  %v298 = vadd.f32 0.0, %v297
  %v299 = vpop.f32.mrb[0].mxu0
  %300 = vmatprep.mubr.f32.mxu0 0.0
  %301 = vmatmul.mubr.f32.gmra.mrb[0].mxu0 %v105
  %v302 = vpop.f32.mrb[0].mxu0
  %v303 = vadd.f32 0.0, %v302
  %v304 = vpop.f32.mrb[0].mxu0
  %305 = vmatprep.mubr.f32.mxu0 0.0
  %306 = vmatmul.mubr.f32.gmra.mrb[0].mxu0 %v108
  %v307 = vpop.f32.mrb[0].mxu0
  %v308 = vadd.f32 0.0, %v307
  %v309 = vpop.f32.mrb[0].mxu0
  %310 = vmatprep.mubr.f32.mxu0 0.0
  %311 = vmatmul.mubr.f32.gmra.mrb[0].mxu0 %v111
  %v312 = vpop.f32.mrb[0].mxu0
  %v313 = vadd.f32 0.0, %v312
  %v314 = vpop.f32.mrb[0].mxu0
  %315 = vmatprep.mubr.f32.mxu0 0.0
  %316 = vmatmul.mubr.f32.gmra.mrb[0].mxu0 %v114
  %v317 = vpop.f32.mrb[0].mxu0
  %v318 = vadd.f32 0.0, %v317
  %v319 = vpop.f32.mrb[0].mxu0
  %320 = vmatprep.mubr.f32.mxu0 0.0
  %321 = vmatmul.mubr.f32.gmra.mrb[0].mxu0 %v117
  %v322 = vpop.f32.mrb[0].mxu0
  %v323 = vadd.f32 0.0, %v322
  %v324 = vpop.f32.mrb[0].mxu0
  %325 = vmatprep.mubr.f32.mxu0 0.0
  %326 = vmatmul.mubr.f32.gmra.mrb[0].mxu0 %v120
  %v327 = vpop.f32.mrb[0].mxu0
  %v328 = vadd.f32 0.0, %v327
  %v329 = vpop.f32.mrb[0].mxu0
  %330 = vmatprep.mubr.f32.mxu0 0.0
  %331 = vmatmul.mubr.f32.gmra.mrb[0].mxu0 %v123
  %v332 = vpop.f32.mrb[0].mxu0
  %v333 = vadd.f32 0.0, %v332
  %v334 = vpop.f32.mrb[0].mxu0
  %335 = vmatprep.mubr.f32.mxu0 0.0
  %336 = vmatmul.mubr.f32.gmra.mrb[0].mxu0 %v126
  %v337 = vpop.f32.mrb[0].mxu0
  %v338 = vadd.f32 0.0, %v337
  %v339 = vpop.f32.mrb[0].mxu0
  %340 = vmatprep.mubr.f32.mxu0 0.0
  %341 = vmatmul.mubr.f32.gmra.mrb[0].mxu0 %v129
  %v342 = vpop.f32.mrb[0].mxu0
  %v343 = vadd.f32 0.0, %v342
  %v344 = vpop.f32.mrb[0].mxu0
  %345 = vmatprep.mubr.f32.mxu0 0.0
  %346 = vmatmul.mubr.f32.gmra.mrb[0].mxu0 %v132
  %v347 = vpop.f32.mrb[0].mxu0
  %v348 = vadd.f32 0.0, %v347
  %v349 = vpop.f32.mrb[0].mxu0
  %350 = vmatprep.mubr.f32.mxu0 0.0
  %351 = vmatmul.mubr.f32.gmra.mrb[0].mxu0 %v135
  %v352 = vpop.f32.mrb[0].mxu0
  %v353 = vadd.f32 0.0, %v352
  %v354 = vpop.f32.mrb[0].mxu0
  %355 = vmatprep.mubr.f32.mxu0 0.0
  %356 = vmatmul.mubr.f32.gmra.mrb[0].mxu0 %v138
  %v357 = vpop.f32.mrb[0].mxu0
  %v358 = vadd.f32 0.0, %v357
  %v359 = vpop.f32.mrb[0].mxu0
  %360 = vmatprep.mubr.f32.mxu0 0.0
  %361 = vmatmul.mubr.f32.gmra.mrb[0].mxu0 %v141
  %v362 = vpop.f32.mrb[0].mxu0
  %v363 = vadd.f32 0.0, %v362
  %v364 = vpop.f32.mrb[0].mxu0
  %365 = vmatprep.mubr.f32.mxu0 0.0
  %366 = vmatmul.mubr.f32.gmra.mrb[0].mxu0 %v144
  %v367 = vpop.f32.mrb[0].mxu0
  %v368 = vadd.f32 0.0, %v367
  %v369 = vpop.f32.mrb[0].mxu0
  %370 = vdwg.mxu0
  %v371 = vmul.f32 %v213, 0.125
  %v372 = vmul.f32 %v218, 0.125
  %v373 = vmul.f32 %v223, 0.125
  %v374 = vmul.f32 %v228, 0.125
  %v375 = vmul.f32 %v233, 0.125
  %v376 = vmul.f32 %v238, 0.125
  %v377 = vmul.f32 %v243, 0.125
  %v378 = vmul.f32 %v248, 0.125
  %v379 = vmul.f32 %v253, 0.125
  %v380 = vmul.f32 %v258, 0.125
  %v381 = vmul.f32 %v263, 0.125
  %v382 = vmul.f32 %v268, 0.125
  %v383 = vmul.f32 %v273, 0.125
  %v384 = vmul.f32 %v278, 0.125
  %v385 = vmul.f32 %v283, 0.125
  %v386 = vmul.f32 %v288, 0.125
  %v387 = vmul.f32 %v293, 0.125
  %v388 = vmul.f32 %v298, 0.125
  %v389 = vmul.f32 %v303, 0.125
  %v390 = vmul.f32 %v308, 0.125
  %v391 = vmul.f32 %v313, 0.125
  %v392 = vmul.f32 %v318, 0.125
  %v393 = vmul.f32 %v323, 0.125
  %v394 = vmul.f32 %v328, 0.125
  %v395 = vmul.f32 %v333, 0.125
  %v396 = vmul.f32 %v338, 0.125
  %v397 = vmul.f32 %v343, 0.125
  %v398 = vmul.f32 %v348, 0.125
  %v399 = vmul.f32 %v353, 0.125
  %v400 = vmul.f32 %v358, 0.125
  %v401 = vmul.f32 %v363, 0.125
  %v402 = vmul.f32 %v368, 0.125
  %vm403 = vcmask 48128
  %404 = vst.msk [vmem:[%s2] sm:$0xff] %vm403, %v371
  %405 = vst.msk [vmem:[%s2 + $0x8] sm:$0xff] %vm403, %v372
  %406 = vst.msk [vmem:[%s2 + $0x10] sm:$0xff] %vm403, %v373
  %407 = vst.msk [vmem:[%s2 + $0x18] sm:$0xff] %vm403, %v374
  %408 = vst.msk [vmem:[%s2 + $0x20] sm:$0xff] %vm403, %v375
  %409 = vst.msk [vmem:[%s2 + $0x28] sm:$0xff] %vm403, %v376
  %410 = vst.msk [vmem:[%s2 + $0x30] sm:$0xff] %vm403, %v377
  %411 = vst.msk [vmem:[%s2 + $0x38] sm:$0xff] %vm403, %v378
  %412 = vst.msk [vmem:[%s2 + $0x40] sm:$0xff] %vm403, %v379
  %413 = vst.msk [vmem:[%s2 + $0x48] sm:$0xff] %vm403, %v380
  %414 = vst.msk [vmem:[%s2 + $0x50] sm:$0xff] %vm403, %v381
  %415 = vst.msk [vmem:[%s2 + $0x58] sm:$0xff] %vm403, %v382
  %416 = vst.msk [vmem:[%s2 + $0x60] sm:$0xff] %vm403, %v383
  %417 = vst.msk [vmem:[%s2 + $0x68] sm:$0xff] %vm403, %v384
  %418 = vst.msk [vmem:[%s2 + $0x70] sm:$0xff] %vm403, %v385
  %419 = vst.msk [vmem:[%s2 + $0x78] sm:$0xff] %vm403, %v386
  %420 = vst.msk [vmem:[%s2 + $0x80] sm:$0xff] %vm403, %v387
  %421 = vst.msk [vmem:[%s2 + $0x88] sm:$0xff] %vm403, %v388
  %422 = vst.msk [vmem:[%s2 + $0x90] sm:$0xff] %vm403, %v389
  %423 = vst.msk [vmem:[%s2 + $0x98] sm:$0xff] %vm403, %v390
  %424 = vst.msk [vmem:[%s2 + $0xa0] sm:$0xff] %vm403, %v391
  %425 = vst.msk [vmem:[%s2 + $0xa8] sm:$0xff] %vm403, %v392
  %426 = vst.msk [vmem:[%s2 + $0xb0] sm:$0xff] %vm403, %v393
  %427 = vst.msk [vmem:[%s2 + $0xb8] sm:$0xff] %vm403, %v394
  %428 = vst.msk [vmem:[%s2 + $0xc0] sm:$0xff] %vm403, %v395
  %429 = vst.msk [vmem:[%s2 + $0xc8] sm:$0xff] %vm403, %v396
  %430 = vst.msk [vmem:[%s2 + $0xd0] sm:$0xff] %vm403, %v397
  %431 = vst.msk [vmem:[%s2 + $0xd8] sm:$0xff] %vm403, %v398
  %432 = vst.msk [vmem:[%s2 + $0xe0] sm:$0xff] %vm403, %v399
  %433 = vst.msk [vmem:[%s2 + $0xe8] sm:$0xff] %vm403, %v400
  %434 = vst.msk [vmem:[%s2 + $0xf0] sm:$0xff] %vm403, %v401
  %435 = vst.msk [vmem:[%s2 + $0xf8] sm:$0xff] %vm403, %v402
  // Predicated region
  $region10: #{tpu_custom_call.1} parent=0 // pred_check
    _
  $region11: #{tpu_custom_call.1} parent=0 // pred_check_branch
    %437 = sbr.rel (0) target = $region13
  $region12: #{tpu_custom_call.1} parent=0 // pred_region
    _
  $region13: #{tpu_custom_call.1} parent=0 // pred_fallthru
    _
  // Predicated region
  $region14: #{tpu_custom_call.1} parent=0 // pred_check
    _
  $region15: #{tpu_custom_call.1} parent=0 // pred_check_branch
    %439 = sbr.rel (0) target = $region17
  $region16: #{tpu_custom_call.1} parent=0 // pred_region
    _
  $region17: #{tpu_custom_call.1} parent=0 // pred_fallthru
    _

</llo_original>
